<compile_context>
chip_gen: v5e
topology: v5e:2x2
jax: 0.10.0
libtpu: 0.0.40
codegen_flags: <defaults>
</compile_context>

<pallas_src>
import functools

import jax
import jax.numpy as jnp
from jax.experimental import pallas as pl
from jax.experimental.pallas import tpu as pltpu

_LANE = 128
_LOOPED_C_MAX = 64          # unroll the per-channel loop only for modest channel counts


def _round_up(a, b):
    return -(-a // b) * b


# ----------------------------------------------------------------------------- kernels
def _kernel_looped(x_ref, o_ref, *, alpha, inv_alpha):
    """Per-channel (unrolled) logsumexp. Live temporaries: one channel slice plus three
    thin f32 accumulators -> blocks can be large without blowing (v7x) VMEM."""
    C = x_ref.shape[1]
    xc = lambda c: x_ref[:, c].astype(jnp.float32)

    # pass 1: m = max_c(alpha * x)
    m = xc(0) * alpha
    for c in range(1, C):
        m = jnp.maximum(m, xc(c) * alpha)
    # pass 2: s = sum_c exp(alpha * x - m)
    s = jnp.exp(xc(0) * alpha - m)
    for c in range(1, C):
        s = s + jnp.exp(xc(c) * alpha - m)
    # logsumexp(alpha * x) / alpha   (multiply by precomputed 1/alpha, no divide)
    lse = (jnp.log(s) + m) * inv_alpha
    # pass 3: out = exp(x - lse)
    # TODO(synk): alpha == 1.0 could cache p = exp(x - m) and use one reciprocal to drop
    # an exp/element (EUP relief for bf16 on v7x); kept generic for robustness.
    for c in range(C):
        o_ref[:, c] = jnp.exp(xc(c) - lse).astype(o_ref.dtype)


def _kernel_vectorized(x_ref, o_ref, *, alpha, inv_alpha):
    """Whole-block variant (large C, or the non-128-aligned fallback layout)."""
    x = x_ref[...].astype(jnp.float32)
    ax = x * alpha
    m = jnp.max(ax, axis=1, keepdims=True)
    s = jnp.sum(jnp.exp(ax - m), axis=1, keepdims=True)
    lse = (jnp.log(s) + m) * inv_alpha
    o_ref[...] = jnp.exp(x - lse).astype(o_ref.dtype)


# ------------------------------------------------------------------------------- tiler
def _live_vmem_bytes(tb, C, g, itemsize, *, c_on_sublanes, looped):
    """Model live VMEM: in + out blocks (double-buffered) + in-kernel f32 temporaries,
    including sublane-padding of the VMEM layout."""
    lanes = g * _LANE
    pack = 8 * max(1, 4 // itemsize)          # min sublane rows: 8 f32 / 16 bf16 / 32 int8
    if c_on_sublanes:                          # block (tb, C, lanes): C sits on sublanes
        buf = tb * _round_up(C, pack) * lanes * itemsize
        slab = _round_up(tb, 8) * lanes * 4                    # one thin f32 temp
        full = tb * _round_up(C, 8) * lanes * 4                # one block-sized f32 temp
    else:                                      # block (tb, C, g, 128)
        buf = tb * C * _round_up(g, pack) * _LANE * itemsize
        slab = tb * _round_up(g, 8) * _LANE * 4
        full = tb * C * _round_up(g, 8) * _LANE * 4
    temps = 5 * slab if looped else (4 * full + 3 * slab)
    return 4 * buf + temps                     # in + out, each double-buffered


def _choose_tiles(N, C, G, itemsize, *, c_on_sublanes, looped, vmem_capacity):
    """Pick (batch_per_block, lane_groups_per_block) for a 2-D (batch, spatial) grid."""
    pack = 8 * max(1, 4 // itemsize)
    budget = max(8 << 20, int(0.45 * vmem_capacity))   # generation-aware live-VMEM target
    max_block_bytes = 16 << 20                         # soft cap on a single block's data

    def ok(tb, g):
        if tb * C * g * _LANE * itemsize > max_block_bytes:
            return False
        return _live_vmem_bytes(tb, C, g, itemsize,
                                c_on_sublanes=c_on_sublanes, looped=looped) <= budget

    # spatial lane-groups per block (dtype-aware sublane step when groups sit on sublanes)
    step = 1 if c_on_sublanes else pack
    if G <= step or ok(1, G):
        g = G                                   # full extent is always layout-legal
    else:
        g = step
        while g * 2 <= G and ok(1, g * 2):
            g *= 2
        while g + step <= G and ok(1, g + step):
            g += step

    # batch elements per block: amortize the ~0.35 us per-grid-step overhead
    tb = 1
    while tb * 2 <= N and ok(tb * 2, g):
        tb *= 2
    while tb + 1 <= N and ok(tb + 1, g):
        tb += 1

    # keep >= 2 grid steps so dual-TensorCore chips (v7x) use both cores
    if pl.cdiv(N, tb) * pl.cdiv(G, g) < 2:
        if N >= 2:
            tb = (N + 1) // 2
        elif c_on_sublanes and G >= 2:
            g = (G + 1) // 2
        elif (not c_on_sublanes) and G > pack:
            g_half = _round_up(-(-G // 2), pack)
            if g_half >= G:
                g_half = (G // pack) * pack
            if pack <= g_half < G:
                g = g_half
    return tb, g


def _vmem_capacity_bytes():
    try:
        return int(pltpu.get_tpu_info().vmem_capacity_bytes)
    except Exception:
        return 64 << 20            # conservative default (v7x per-TensorCore VMEM)


# ----------------------------------------------------------------------------- wrapper
def hyper_lnorm(x, alpha):
    """x: (N, C, H, W) -> exp(x - logsumexp(alpha*x, axis=1, keepdims=True)/alpha)."""
    N, C, H, W = x.shape
    HW = H * W
    itemsize = jnp.dtype(x.dtype).itemsize
    vmem_cap = _vmem_capacity_bytes()

    alpha = float(alpha)
    aligned = (HW % _LANE == 0)
    looped = aligned and (C <= _LOOPED_C_MAX)
    kernel = functools.partial(_kernel_looped if looped else _kernel_vectorized,
                               alpha=alpha, inv_alpha=1.0 / alpha)

    elems = N * C * HW
    cost = pl.CostEstimate(flops=6 * elems,
                           transcendentals=2 * elems + N * HW,
                           bytes_accessed=2 * elems * itemsize)
    cparams = pltpu.CompilerParams(
        dimension_semantics=("parallel", "parallel"),
        vmem_limit_bytes=min(int(0.75 * vmem_cap), 128 << 20))

    if aligned:
        # Free reshape to (N, C, R, 128): channel reduction over a leading axis, last two
        # dims fully dense. No host pad / slice, no extra HBM traffic.
        R = HW // _LANE
        xv = x.reshape(N, C, R, _LANE)
        tb, g = _choose_tiles(N, C, R, itemsize, c_on_sublanes=False,
                              looped=looped, vmem_capacity=vmem_cap)
        block = (tb, C, g, _LANE)
        grid = (pl.cdiv(N, tb), pl.cdiv(R, g))
        spec = pl.BlockSpec(block, lambda n, r: (n, 0, r, 0))
        out = pl.pallas_call(
            kernel,
            out_shape=jax.ShapeDtypeStruct((N, C, R, _LANE), x.dtype),
            grid=grid, in_specs=[spec], out_specs=spec,
            compiler_params=cparams, cost_estimate=cost,
        )(xv)
        return out.reshape(N, C, H, W)

    # Fallback (HW not a multiple of 128): keep the (N, C, HW) view and let Pallas mask
    # the boundary block. Channel reduction is per lane column, so masked (garbage) lanes
    # never affect valid columns and are never written back. No pad, no slice.
    G = pl.cdiv(HW, _LANE)
    xv = x.reshape(N, C, HW)
    tb, g = _choose_tiles(N, C, G, itemsize, c_on_sublanes=True,
                          looped=False, vmem_capacity=vmem_cap)
    L = HW if g >= G else g * _LANE            # full extent is always layout-legal
    block = (tb, C, L)
    grid = (pl.cdiv(N, tb), pl.cdiv(HW, L))
    spec = pl.BlockSpec(block, lambda n, l: (n, 0, l))
    out = pl.pallas_call(
        kernel,
        out_shape=jax.ShapeDtypeStruct((N, C, HW), x.dtype),
        grid=grid, in_specs=[spec], out_specs=spec,
        compiler_params=cparams, cost_estimate=cost,
    )(xv)
    return out.reshape(N, C, H, W)


# --------------------------------------------------------------------------- reference
def hyper_lnorm_ref(x, alpha):
    xf = x.astype(jnp.float32)
    lse = jax.scipy.special.logsumexp(xf * alpha, axis=1, keepdims=True) / alpha
    return jnp.exp(xf - lse).astype(x.dtype)


if __name__ == "__main__":
    key = jax.random.PRNGKey(0)
    N, C, H, W = 2, 4, 16, 16
    alpha = 1.2          # HyperLNorm(alpha=...) constructor argument

    x = jax.random.normal(key, (N, C, H, W), dtype=jnp.float32)

    out = jax.block_until_ready(hyper_lnorm(x, alpha))
    ref = hyper_lnorm_ref(x, alpha)

    assert out.shape == (N, C, H, W)
    assert jnp.allclose(out, ref, atol=1e-5, rtol=1e-5), "mismatch vs JAX reference"
    print("KERNEL_OK")
</pallas_src>

<mosaic_0001>
module attributes {stable_mosaic.version = 11 : i64} {
  func.func @_kernel_looped(%arg0: i32, %arg1: i32, %arg2: memref<1x4x2x128xf32, #tpu.memory_space<vmem>>, %arg3: memref<1x4x2x128xf32, #tpu.memory_space<vmem>>) attributes {dimension_semantics = [#tpu.dimension_semantics<parallel>, #tpu.dimension_semantics<parallel>], iteration_bounds = array<i64: 2, 1>, scalar_prefetch = 0 : i64, scratch_operands = 0 : i64, tpu.core_type = #tpu.core_type<tc>, window_params = [{transform_indices = @transform_0, window_bounds = array<i64: 1, 4, 2, 128>}, {transform_indices = @transform_1, window_bounds = array<i64: 1, 4, 2, 128>}]} {
    %c0 = arith.constant 0 : index
    %c0_0 = arith.constant 0 : index
    %c0_1 = arith.constant 0 : index
    %c0_2 = arith.constant 0 : index
    %0 = vector.load %arg2[%c0, %c0_0, %c0_1, %c0_2] : memref<1x4x2x128xf32, #tpu.memory_space<vmem>>, vector<1x1x2x128xf32>
    %1 = vector.shape_cast %0 : vector<1x1x2x128xf32> to vector<1x2x128xf32>
    %cst = arith.constant 1.200000e+00 : f32
    %2 = vector.broadcast %cst : f32 to vector<1x2x128xf32>
    %3 = arith.mulf %1, %2 : vector<1x2x128xf32>
    %c0_3 = arith.constant 0 : index
    %c1 = arith.constant 1 : index
    %c0_4 = arith.constant 0 : index
    %c0_5 = arith.constant 0 : index
    %4 = vector.load %arg2[%c0_3, %c1, %c0_4, %c0_5] : memref<1x4x2x128xf32, #tpu.memory_space<vmem>>, vector<1x1x2x128xf32>
    %5 = vector.shape_cast %4 : vector<1x1x2x128xf32> to vector<1x2x128xf32>
    %cst_6 = arith.constant 1.200000e+00 : f32
    %6 = vector.broadcast %cst_6 : f32 to vector<1x2x128xf32>
    %7 = arith.mulf %5, %6 : vector<1x2x128xf32>
    %8 = arith.maximumf %3, %7 : vector<1x2x128xf32>
    %c0_7 = arith.constant 0 : index
    %c2 = arith.constant 2 : index
    %c0_8 = arith.constant 0 : index
    %c0_9 = arith.constant 0 : index
    %9 = vector.load %arg2[%c0_7, %c2, %c0_8, %c0_9] : memref<1x4x2x128xf32, #tpu.memory_space<vmem>>, vector<1x1x2x128xf32>
    %10 = vector.shape_cast %9 : vector<1x1x2x128xf32> to vector<1x2x128xf32>
    %cst_10 = arith.constant 1.200000e+00 : f32
    %11 = vector.broadcast %cst_10 : f32 to vector<1x2x128xf32>
    %12 = arith.mulf %10, %11 : vector<1x2x128xf32>
    %13 = arith.maximumf %8, %12 : vector<1x2x128xf32>
    %c0_11 = arith.constant 0 : index
    %c3 = arith.constant 3 : index
    %c0_12 = arith.constant 0 : index
    %c0_13 = arith.constant 0 : index
    %14 = vector.load %arg2[%c0_11, %c3, %c0_12, %c0_13] : memref<1x4x2x128xf32, #tpu.memory_space<vmem>>, vector<1x1x2x128xf32>
    %15 = vector.shape_cast %14 : vector<1x1x2x128xf32> to vector<1x2x128xf32>
    %cst_14 = arith.constant 1.200000e+00 : f32
    %16 = vector.broadcast %cst_14 : f32 to vector<1x2x128xf32>
    %17 = arith.mulf %15, %16 : vector<1x2x128xf32>
    %18 = arith.maximumf %13, %17 : vector<1x2x128xf32>
    %c0_15 = arith.constant 0 : index
    %c0_16 = arith.constant 0 : index
    %c0_17 = arith.constant 0 : index
    %c0_18 = arith.constant 0 : index
    %19 = vector.load %arg2[%c0_15, %c0_16, %c0_17, %c0_18] : memref<1x4x2x128xf32, #tpu.memory_space<vmem>>, vector<1x1x2x128xf32>
    %20 = vector.shape_cast %19 : vector<1x1x2x128xf32> to vector<1x2x128xf32>
    %cst_19 = arith.constant 1.200000e+00 : f32
    %21 = vector.broadcast %cst_19 : f32 to vector<1x2x128xf32>
    %22 = arith.mulf %20, %21 : vector<1x2x128xf32>
    %23 = arith.subf %22, %18 : vector<1x2x128xf32>
    %24 = math.exp %23 : vector<1x2x128xf32>
    %c0_20 = arith.constant 0 : index
    %c1_21 = arith.constant 1 : index
    %c0_22 = arith.constant 0 : index
    %c0_23 = arith.constant 0 : index
    %25 = vector.load %arg2[%c0_20, %c1_21, %c0_22, %c0_23] : memref<1x4x2x128xf32, #tpu.memory_space<vmem>>, vector<1x1x2x128xf32>
    %26 = vector.shape_cast %25 : vector<1x1x2x128xf32> to vector<1x2x128xf32>
    %cst_24 = arith.constant 1.200000e+00 : f32
    %27 = vector.broadcast %cst_24 : f32 to vector<1x2x128xf32>
    %28 = arith.mulf %26, %27 : vector<1x2x128xf32>
    %29 = arith.subf %28, %18 : vector<1x2x128xf32>
    %30 = math.exp %29 : vector<1x2x128xf32>
    %31 = arith.addf %24, %30 : vector<1x2x128xf32>
    %c0_25 = arith.constant 0 : index
    %c2_26 = arith.constant 2 : index
    %c0_27 = arith.constant 0 : index
    %c0_28 = arith.constant 0 : index
    %32 = vector.load %arg2[%c0_25, %c2_26, %c0_27, %c0_28] : memref<1x4x2x128xf32, #tpu.memory_space<vmem>>, vector<1x1x2x128xf32>
    %33 = vector.shape_cast %32 : vector<1x1x2x128xf32> to vector<1x2x128xf32>
    %cst_29 = arith.constant 1.200000e+00 : f32
    %34 = vector.broadcast %cst_29 : f32 to vector<1x2x128xf32>
    %35 = arith.mulf %33, %34 : vector<1x2x128xf32>
    %36 = arith.subf %35, %18 : vector<1x2x128xf32>
    %37 = math.exp %36 : vector<1x2x128xf32>
    %38 = arith.addf %31, %37 : vector<1x2x128xf32>
    %c0_30 = arith.constant 0 : index
    %c3_31 = arith.constant 3 : index
    %c0_32 = arith.constant 0 : index
    %c0_33 = arith.constant 0 : index
    %39 = vector.load %arg2[%c0_30, %c3_31, %c0_32, %c0_33] : memref<1x4x2x128xf32, #tpu.memory_space<vmem>>, vector<1x1x2x128xf32>
    %40 = vector.shape_cast %39 : vector<1x1x2x128xf32> to vector<1x2x128xf32>
    %cst_34 = arith.constant 1.200000e+00 : f32
    %41 = vector.broadcast %cst_34 : f32 to vector<1x2x128xf32>
    %42 = arith.mulf %40, %41 : vector<1x2x128xf32>
    %43 = arith.subf %42, %18 : vector<1x2x128xf32>
    %44 = math.exp %43 : vector<1x2x128xf32>
    %45 = arith.addf %38, %44 : vector<1x2x128xf32>
    %46 = math.log %45 : vector<1x2x128xf32>
    %47 = arith.addf %46, %18 : vector<1x2x128xf32>
    %cst_35 = arith.constant 0.833333313 : f32
    %48 = vector.broadcast %cst_35 : f32 to vector<1x2x128xf32>
    %49 = arith.mulf %47, %48 : vector<1x2x128xf32>
    %c0_36 = arith.constant 0 : index
    %c0_37 = arith.constant 0 : index
    %c0_38 = arith.constant 0 : index
    %c0_39 = arith.constant 0 : index
    %50 = vector.load %arg2[%c0_36, %c0_37, %c0_38, %c0_39] : memref<1x4x2x128xf32, #tpu.memory_space<vmem>>, vector<1x1x2x128xf32>
    %51 = vector.shape_cast %50 : vector<1x1x2x128xf32> to vector<1x2x128xf32>
    %52 = arith.subf %51, %49 : vector<1x2x128xf32>
    %53 = math.exp %52 : vector<1x2x128xf32>
    %c0_40 = arith.constant 0 : index
    %c0_41 = arith.constant 0 : index
    %c0_42 = arith.constant 0 : index
    %c0_43 = arith.constant 0 : index
    %54 = vector.load %arg3[%c0_40, %c0_41, %c0_42, %c0_43] : memref<1x4x2x128xf32, #tpu.memory_space<vmem>>, vector<1x1x2x128xf32>
    %55 = vector.shape_cast %54 : vector<1x1x2x128xf32> to vector<1x2x128xf32>
    %56 = vector.shape_cast %53 : vector<1x2x128xf32> to vector<1x1x2x128xf32>
    tpu.vector_store %arg3[%c0_40, %c0_41, %c0_42, %c0_43], %56 {strides = array<i32>} : memref<1x4x2x128xf32, #tpu.memory_space<vmem>>, vector<1x1x2x128xf32>,
    %c0_44 = arith.constant 0 : index
    %c1_45 = arith.constant 1 : index
    %c0_46 = arith.constant 0 : index
    %c0_47 = arith.constant 0 : index
    %57 = vector.load %arg2[%c0_44, %c1_45, %c0_46, %c0_47] : memref<1x4x2x128xf32, #tpu.memory_space<vmem>>, vector<1x1x2x128xf32>
    %58 = vector.shape_cast %57 : vector<1x1x2x128xf32> to vector<1x2x128xf32>
    %59 = arith.subf %58, %49 : vector<1x2x128xf32>
    %60 = math.exp %59 : vector<1x2x128xf32>
    %c0_48 = arith.constant 0 : index
    %c1_49 = arith.constant 1 : index
    %c0_50 = arith.constant 0 : index
    %c0_51 = arith.constant 0 : index
    %61 = vector.load %arg3[%c0_48, %c1_49, %c0_50, %c0_51] : memref<1x4x2x128xf32, #tpu.memory_space<vmem>>, vector<1x1x2x128xf32>
    %62 = vector.shape_cast %61 : vector<1x1x2x128xf32> to vector<1x2x128xf32>
    %63 = vector.shape_cast %60 : vector<1x2x128xf32> to vector<1x1x2x128xf32>
    tpu.vector_store %arg3[%c0_48, %c1_49, %c0_50, %c0_51], %63 {strides = array<i32>} : memref<1x4x2x128xf32, #tpu.memory_space<vmem>>, vector<1x1x2x128xf32>,
    %c0_52 = arith.constant 0 : index
    %c2_53 = arith.constant 2 : index
    %c0_54 = arith.constant 0 : index
    %c0_55 = arith.constant 0 : index
    %64 = vector.load %arg2[%c0_52, %c2_53, %c0_54, %c0_55] : memref<1x4x2x128xf32, #tpu.memory_space<vmem>>, vector<1x1x2x128xf32>
    %65 = vector.shape_cast %64 : vector<1x1x2x128xf32> to vector<1x2x128xf32>
    %66 = arith.subf %65, %49 : vector<1x2x128xf32>
    %67 = math.exp %66 : vector<1x2x128xf32>
    %c0_56 = arith.constant 0 : index
    %c2_57 = arith.constant 2 : index
    %c0_58 = arith.constant 0 : index
    %c0_59 = arith.constant 0 : index
    %68 = vector.load %arg3[%c0_56, %c2_57, %c0_58, %c0_59] : memref<1x4x2x128xf32, #tpu.memory_space<vmem>>, vector<1x1x2x128xf32>
    %69 = vector.shape_cast %68 : vector<1x1x2x128xf32> to vector<1x2x128xf32>
    %70 = vector.shape_cast %67 : vector<1x2x128xf32> to vector<1x1x2x128xf32>
    tpu.vector_store %arg3[%c0_56, %c2_57, %c0_58, %c0_59], %70 {strides = array<i32>} : memref<1x4x2x128xf32, #tpu.memory_space<vmem>>, vector<1x1x2x128xf32>,
    %c0_60 = arith.constant 0 : index
    %c3_61 = arith.constant 3 : index
    %c0_62 = arith.constant 0 : index
    %c0_63 = arith.constant 0 : index
    %71 = vector.load %arg2[%c0_60, %c3_61, %c0_62, %c0_63] : memref<1x4x2x128xf32, #tpu.memory_space<vmem>>, vector<1x1x2x128xf32>
    %72 = vector.shape_cast %71 : vector<1x1x2x128xf32> to vector<1x2x128xf32>
    %73 = arith.subf %72, %49 : vector<1x2x128xf32>
    %74 = math.exp %73 : vector<1x2x128xf32>
    %c0_64 = arith.constant 0 : index
    %c3_65 = arith.constant 3 : index
    %c0_66 = arith.constant 0 : index
    %c0_67 = arith.constant 0 : index
    %75 = vector.load %arg3[%c0_64, %c3_65, %c0_66, %c0_67] : memref<1x4x2x128xf32, #tpu.memory_space<vmem>>, vector<1x1x2x128xf32>
    %76 = vector.shape_cast %75 : vector<1x1x2x128xf32> to vector<1x2x128xf32>
    %77 = vector.shape_cast %74 : vector<1x2x128xf32> to vector<1x1x2x128xf32>
    tpu.vector_store %arg3[%c0_64, %c3_65, %c0_66, %c0_67], %77 {strides = array<i32>} : memref<1x4x2x128xf32, #tpu.memory_space<vmem>>, vector<1x1x2x128xf32>,
    return
  }
  func.func @transform_0(%arg0: i32, %arg1: i32) -> (i32, i32, i32, i32) {
    %c0_i32 = arith.constant 0 : i32
    %c0_i32_0 = arith.constant 0 : i32
    %c0_i32_1 = arith.constant 0 : i32
    return %arg0, %c0_i32, %arg1, %c0_i32_0 : i32, i32, i32, i32
  }
  func.func @transform_1(%arg0: i32, %arg1: i32) -> (i32, i32, i32, i32) {
    %c0_i32 = arith.constant 0 : i32
    %c0_i32_0 = arith.constant 0 : i32
    %c0_i32_1 = arith.constant 0 : i32
    return %arg0, %c0_i32, %arg1, %c0_i32_0 : i32, i32, i32, i32
  }
}

</mosaic_0001>

<llo_original>
// kernel: tpu_custom_call.1
$region0: #{tpu_custom_call.1}
  #allocation0 [shape = 'u32[]', space=smem, size = 0x4, offset = 0x4, fixed_abs, tag = 'smem constant byte address 0x4 - core index']
  #allocation1 [shape = 'u32[72,128]{1,0:T(1,128)}', space=vmem, size = 0x9000, scoped, tag = 'internal scratch']
  %s0 = inlined_call_operand.hbm [shape: f32[2,4,2,128], index: 0, kind: input, shape index: {}]
  %s1 = inlined_call_operand.hbm [shape: f32[2,4,2,128], index: 1, kind: output, shape index: {}]
  %s2 = sld [smem:[#allocation0]]
  $region41: #{tpu_custom_call.1} parent=0
    _
  %s4 = ssub.s32 1, %s2
  %s5 = scalar_select 0, %s4, %s2
  $region1: #{tpu_custom_call.1} parent=0
    #allocation2 [shape = 'u8[8192]{0}', space=vmem, size = 0x2000, scoped, tag = 'input window, operand 0']
    #allocation3 [shape = 's32[2]{0}', space=sflag, size = 0x8, scoped, tag = 'scoped memory for tpu_custom_call.1']
    #allocation4 [shape = 's32[2]{0}', space=sflag, size = 0x8, scoped, tag = 'scoped memory for tpu_custom_call.1']
    #allocation5 [shape = 'u8[8192]{0}', space=vmem, size = 0x2000, scoped, tag = 'output window, operand 0']
    %6 = vsyncpa [#allocation3], 0
    %s7 = scalar_lea.sflag [#allocation3], 1
    %8 = vsyncpa %s7, 0
    %9 = vsyncpa [#allocation4], 0
    %s10 = scalar_lea.sflag [#allocation4], 1
    %11 = vsyncpa %s10, 0
    loop: start=0, step=1, limit=4
    $region2: #{tpu_custom_call.1} parent=1 // loop_pre_header
      _
    $region3: #{tpu_custom_call.1} parent=1 // loop_header
      %s13 = sphi 0, %s17
      %p14 = scmp.ge.s32.totalorder %s13, 4
      %s20 = sphi 0, %s32
      %s21 = sphi 0, %s28
      %s22 = sphi 0, %s20
      %s23 = sphi 0, %s21
      %s24 = sphi 0, %s22
      %s25 = sphi 0, %s23
      %s37 = sphi 0, %s39
      %s40 = sphi 0, %s37
      %s41 = sphi 0, %s40
      %s57 = sphi 0, %s41
      %s65 = sphi 0, %s67
      %s68 = sphi 0, %s65
      %s69 = sphi 0, %s68
      %s85 = sphi 0, %s69
    $region4: #{tpu_custom_call.1} parent=1 // loop_header_branch
      %16 = sbr.rel (%p14) target = $region8
    $region5: #{tpu_custom_call.1} parent=1 // loop_body
      %s18 = ssub.s32 %s13, 1
      %s19 = ssub.s32 %s13, 2
      %s26 = sadd.s32 1, %s21
      %p27 = scmp.ge.s32.totalorder %s26, 1
      %s28 = scalar_select %p27, 0, %s26
      %s29 = sadd.s32 1, %s20
      %s30 = scalar_select %p27, %s29, %s20
      %p31 = scmp.ge.s32.totalorder %s30, 2
      %s32 = scalar_select %p31, 0, %s30
      %s33 = ssub.s32 %s20, %s32
      %s34 = ssub.s32 %s21, %s28
      %s35 = sor.u32 %s33, %s34
      %p36 = scmp.eq.s32.totalorder %s35, 0
      %s38 = sadd.s32 %s37, 1
      %s39 = scalar_select %p36, %s37, %s38
      %p42 = pneg %p36
      %p43 = scmp.eq.s32.totalorder %s13, 1
      %p44 = por %p42, %p43
      %p45 = scmp.ne.s32.totalorder %s37, %s40
      %p46 = scmp.eq.s32.totalorder %s13, 0
      %p47 = por %p45, %p46
      %p48 = scmp.ne.s32.totalorder %s37, %s40
      %p49 = scmp.eq.s32.totalorder %s18, 1
      %p50 = por %p48, %p49
      %p51 = scmp.ne.s32.totalorder %s40, %s41
      %p52 = scmp.eq.s32.totalorder %s18, 0
      %p53 = por %p51, %p52
      %p54 = scmp.ne.s32.totalorder %s40, %s41
      %p55 = scmp.eq.s32.totalorder %s19, 1
      %p56 = por %p54, %p55
      %p58 = scmp.ne.s32.totalorder %s41, %s57
      %p59 = scmp.eq.s32.totalorder %s19, 0
      %p60 = por %p58, %p59
      %s61 = ssub.s32 %s20, %s32
      %s62 = ssub.s32 %s21, %s28
      %s63 = sor.u32 %s61, %s62
      %p64 = scmp.eq.s32.totalorder %s63, 0
      %s66 = sadd.s32 %s65, 1
      %s67 = scalar_select %p64, %s65, %s66
      %p70 = pneg %p64
      %p71 = scmp.eq.s32.totalorder %s13, 1
      %p72 = por %p70, %p71
      %p73 = scmp.ne.s32.totalorder %s65, %s68
      %p74 = scmp.eq.s32.totalorder %s13, 0
      %p75 = por %p73, %p74
      %p76 = scmp.ne.s32.totalorder %s65, %s68
      %p77 = scmp.eq.s32.totalorder %s18, 1
      %p78 = por %p76, %p77
      %p79 = scmp.ne.s32.totalorder %s68, %s69
      %p80 = scmp.eq.s32.totalorder %s18, 0
      %p81 = por %p79, %p80
      %p82 = scmp.ne.s32.totalorder %s68, %s69
      %p83 = scmp.eq.s32.totalorder %s19, 1
      %p84 = por %p82, %p83
      %p86 = scmp.ne.s32.totalorder %s69, %s85
      %p87 = scmp.eq.s32.totalorder %s19, 0
      %p88 = por %p86, %p87
      %p89 = scmp.le.s32.totalorder 1, %s13
      %p90 = scmp.lt.s32.totalorder %s13, 3
      %p91 = pnand %p89, %p90
      %p92 = pneg %p91
      // Predicated region
      $region9: #{tpu_custom_call.1} parent=5 // pred_check
        _
      $region10: #{tpu_custom_call.1} parent=5 // pred_check_branch
        %94 = sbr.rel (%p91) target = $region12
      $region11: #{tpu_custom_call.1} parent=5 // pred_region
        %s95 = ssub.s32 %s13, 1
      $region12: #{tpu_custom_call.1} parent=5 // pred_fallthru
        _
      %p96 = scmp.lt.s32.totalorder %s13, 2
      // Predicated region
      $region13: #{tpu_custom_call.1} parent=5 // pred_check
        %p97 = pneg %p96
      $region14: #{tpu_custom_call.1} parent=5 // pred_check_branch
        %99 = sbr.rel (%p97) target = $region16
      $region15: #{tpu_custom_call.1} parent=5 // pred_region
        // Predicated region
        $region17: #{tpu_custom_call.1} parent=15 // pred_check
          %p100 = pneg %p47
        $region18: #{tpu_custom_call.1} parent=15 // pred_check_branch
          %102 = sbr.rel (%p100) target = $region20
        $region19: #{tpu_custom_call.1} parent=15 // pred_region
          %s103 = sand.u32 %s37, 1
          %s104 = scalar_lea.sflag [#allocation3], %s103
          %s105 = sand.u32 %s37, 1
          %s106 = smul.addr %s105, 8
          %s107 = scalar_lea.vmem [#allocation2], %s106
          %109 = vsyncadd %s104, 0
          %s110 = smul.addr %s20, 4
          %s111 = sadd.s32 %s21, %s110
          %s112 = smul.addr %s111, 2
          %s113 = scalar_lea.hbm %s0, %s112
          %s114 = sshll.u32 %s113, 4
          %s115 = int_to_ptr.hbm [resolvable:$true] %s114
          %s116 = sshll.u32 %s107, 4
          %s117 = int_to_ptr.vmem [resolvable:$true] %s116
          %122 = dma.hbm_to_vmem [thread:$0]  %s115, 128, %s117, %s104, 32, 32, 2
        $region20: #{tpu_custom_call.1} parent=15 // pred_fallthru
          _
      $region16: #{tpu_custom_call.1} parent=5 // pred_fallthru
        _
      %p123 = scmp.le.s32.totalorder 1, %s13
      %p124 = scmp.lt.s32.totalorder %s13, 3
      %p125 = pnand %p123, %p124
      %p126 = pneg %p125
      // Predicated region
      $region21: #{tpu_custom_call.1} parent=5 // pred_check
        _
      $region22: #{tpu_custom_call.1} parent=5 // pred_check_branch
        %128 = sbr.rel (%p125) target = $region24
      $region23: #{tpu_custom_call.1} parent=5 // pred_region
        %s129 = ssub.s32 %s13, 1
        %s130 = sand.u32 %s40, 1
        %s131 = scalar_lea.sflag [#allocation3], %s130
        %s132 = sand.u32 %s40, 1
        %s133 = smul.addr %s132, 8
        %s134 = scalar_lea.vmem [#allocation2], %s133
        // Predicated region
        $region25: #{tpu_custom_call.1} parent=23 // pred_check
          %p135 = pneg %p53
        $region26: #{tpu_custom_call.1} parent=23 // pred_check_branch
          %137 = sbr.rel (%p135) target = $region28
        $region27: #{tpu_custom_call.1} parent=23 // pred_region
          %139 = dma.done %s131, 128
        $region28: #{tpu_custom_call.1} parent=23 // pred_fallthru
          _
        %s140 = sand.u32 %s40, 1
        %s141 = scalar_lea.sflag [#allocation3], %s140
        %s142 = sand.u32 %s40, 1
        %s143 = smul.addr %s142, 8
        %s144 = scalar_lea.vmem [#allocation2], %s143
        %p145 = pneg %p53
        %p146 = pneg %p50
        %p147 = pneg %p81
        %p148 = pneg %p78
        %s149 = sand.u32 %s68, 1
        %s150 = scalar_lea.sflag [#allocation4], %s149
        %s151 = sand.u32 %s68, 1
        %s152 = smul.addr %s151, 8
        %s153 = scalar_lea.vmem [#allocation5], %s152
        %v154 = vld [vmem:[%s134] sm:$0x3]
        %v155 = vmul.f32 %v154, 1.2
        %s156 = scalar_lea.vmem %s134, 2 [#allocation2]
        %v157 = vld [vmem:[%s156] sm:$0x3]
        %v158 = vmul.f32 %v157, 1.2
        %v159 = vmax.f32 %v155, %v158
        %s160 = scalar_lea.vmem %s134, 4 [#allocation2]
        %v161 = vld [vmem:[%s160] sm:$0x3]
        %v162 = vmul.f32 %v161, 1.2
        %v163 = vmax.f32 %v159, %v162
        %s164 = scalar_lea.vmem %s134, 6 [#allocation2]
        %v165 = vld [vmem:[%s164] sm:$0x3]
        %v166 = vmul.f32 %v165, 1.2
        %v167 = vmax.f32 %v163, %v166
        %v168 = vsub.f32 %v155, %v167
        %v169 = vmul.f32 %v168, 1.442695
        %v170 = vpow.pop %v169
        %v171 = vsub.f32 %v158, %v167
        %v172 = vmul.f32 %v171, 1.442695
        %v173 = vpow.pop %v172
        %v174 = vadd.f32 %v170, %v173
        %v175 = vsub.f32 %v162, %v167
        %v176 = vmul.f32 %v175, 1.442695
        %v177 = vpow.pop %v176
        %v178 = vadd.f32 %v174, %v177
        %v179 = vsub.f32 %v166, %v167
        %v180 = vmul.f32 %v179, 1.442695
        %v181 = vpow.pop %v180
        %v182 = vadd.f32 %v178, %v181
        %v183 = vlog2.pop %v182
        %v184 = vmul.f32 %v183, 0.6931472
        %v185 = vadd.f32 %v184, %v167
        %v186 = vmul.f32 %v185, 0.8333333
        %v187 = vsub.f32 %v154, %v186
        %v188 = vmul.f32 %v187, 1.442695
        %v189 = vpow.pop %v188
        %190 = vst [vmem:[%s153] sm:$0x3] %v189
        %v191 = vld [vmem:[%s156] sm:$0x3]
        %v192 = vsub.f32 %v191, %v186
        %v193 = vmul.f32 %v192, 1.442695
        %v194 = vpow.pop %v193
        %s195 = scalar_lea.vmem %s153, 2 [#allocation5]
        %196 = vst [vmem:[%s195] sm:$0x3] %v194
        %v197 = vld [vmem:[%s160] sm:$0x3]
        %v198 = vsub.f32 %v197, %v186
        %v199 = vmul.f32 %v198, 1.442695
        %v200 = vpow.pop %v199
        %s201 = scalar_lea.vmem %s153, 4 [#allocation5]
        %202 = vst [vmem:[%s201] sm:$0x3] %v200
        %v203 = vld [vmem:[%s164] sm:$0x3]
        %v204 = vsub.f32 %v203, %v186
        %v205 = vmul.f32 %v204, 1.442695
        %v206 = vpow.pop %v205
        %s207 = scalar_lea.vmem %s153, 6 [#allocation5]
        %208 = vst [vmem:[%s207] sm:$0x3] %v206
        %s209 = sand.u32 %s68, 1
        %s210 = scalar_lea.sflag [#allocation4], %s209
        %s211 = sand.u32 %s68, 1
        %s212 = smul.addr %s211, 8
        %s213 = scalar_lea.vmem [#allocation5], %s212
        // Predicated region
        $region29: #{tpu_custom_call.1} parent=23 // pred_check
          %p214 = pneg %p78
        $region30: #{tpu_custom_call.1} parent=23 // pred_check_branch
          %216 = sbr.rel (%p214) target = $region32
        $region31: #{tpu_custom_call.1} parent=23 // pred_region
          %218 = vsyncadd %s210, 0
          %s219 = smul.addr %s22, 4
          %s220 = sadd.s32 %s23, %s219
          %s221 = smul.addr %s220, 2
          %s222 = scalar_lea.hbm %s1, %s221
          %s223 = sshll.u32 %s213, 4
          %s224 = int_to_ptr.vmem [resolvable:$true] %s223
          %s225 = sshll.u32 %s222, 4
          %s226 = int_to_ptr.hbm [resolvable:$true] %s225
          %231 = dma.vmem_to_hbm [thread:$0]  %s224, 128, %s226, %s210, 32, 32, 2
        $region32: #{tpu_custom_call.1} parent=23 // pred_fallthru
          _
      $region24: #{tpu_custom_call.1} parent=5 // pred_fallthru
        _
      %p232 = scmp.le.s32.totalorder 2, %s13
      // Predicated region
      $region33: #{tpu_custom_call.1} parent=5 // pred_check
        %p233 = pneg %p232
      $region34: #{tpu_custom_call.1} parent=5 // pred_check_branch
        %235 = sbr.rel (%p233) target = $region36
      $region35: #{tpu_custom_call.1} parent=5 // pred_region
        %s236 = ssub.s32 %s13, 2
        // Predicated region
        $region37: #{tpu_custom_call.1} parent=35 // pred_check
          %p237 = pneg %p84
        $region38: #{tpu_custom_call.1} parent=35 // pred_check_branch
          %239 = sbr.rel (%p237) target = $region40
        $region39: #{tpu_custom_call.1} parent=35 // pred_region
          %s240 = sand.u32 %s69, 1
          %s241 = scalar_lea.sflag [#allocation4], %s240
          %s242 = sand.u32 %s69, 1
          %s243 = smul.addr %s242, 8
          %s244 = scalar_lea.vmem [#allocation5], %s243
          %246 = dma.done %s241, 128
        $region40: #{tpu_custom_call.1} parent=35 // pred_fallthru
          _
      $region36: #{tpu_custom_call.1} parent=5 // pred_fallthru
        _
    $region6: #{tpu_custom_call.1} parent=1 // loop_footer
      %s17 = sadd.s32 1, %s13
    $region7: #{tpu_custom_call.1} parent=1 // loop_footer_branch
      %12 = sbr.rel target = $region3
    $region8: #{tpu_custom_call.1} parent=1 // loop_exit
      _
    %247 = vsyncpa [#allocation3], 1
    %s248 = scalar_lea.sflag [#allocation3], 1
    %249 = vsyncpa %s248, 1
    %250 = vsyncpa [#allocation4], 1
    %s251 = scalar_lea.sflag [#allocation4], 1
    %252 = vsyncpa %s251, 1

</llo_original>
